<compile_context>
chip_gen: v7x
topology: tpu7x:2x2x1
jax: 0.10.0
libtpu: 0.0.40
codegen_flags: <defaults>
</compile_context>

<pallas_src>
import functools

import jax
import jax.numpy as jnp
from jax import lax
from jax.experimental import pallas as pl
from jax.experimental.pallas import tpu as pltpu


def _round_up(x: int, m: int) -> int:
    return (x + m - 1) // m * m


def _diversity_tile_kernel(zi_ref, zj_ref, inv_i_ref, inv_j_ref, out_ref,
                           *, min_distance: float):
    i = pl.program_id(0)
    j = pl.program_id(1)

    @pl.when(j == 0)
    def _init():
        out_ref[...] = jnp.zeros_like(out_ref)

    # Symmetry: skip strictly-lower tiles; upper tiles are counted twice below.
    @pl.when(j >= i)
    def _compute():
        # Gram tile on the MXU: contract the feature dim of both un-transposed tiles.
        g = lax.dot_general(
            zi_ref[...], zj_ref[...],
            dimension_numbers=(((1,), (1,)), ((), ())),
            preferred_element_type=jnp.float32)
        # Cosine similarity via precomputed inverse row norms (broadcast scales).
        sim = g * inv_i_ref[...] * inv_j_ref[...]
        # Fused clamp(sim,-1,1) + (1 - sim) + relu(min_d - dist).
        hinge = jnp.clip(sim - (1.0 - min_distance), 0.0, min_distance)
        # Off-diagonal tiles of the symmetric matrix appear twice.
        weight = jnp.where(j > i, jnp.float32(2.0), jnp.float32(1.0))
        out_ref[...] += weight * jnp.sum(hinge)


def latent_diversity_loss(z: jax.Array, min_distance: float = 0.1) -> jax.Array:
    """Pallas TPU implementation of LatentDiversityLoss.forward."""
    B, D = z.shape
    if B <= 1:
        # PyTorch returns torch.tensor(0.0) for batch_size <= 1.
        return jnp.float32(0.0)
    min_d = float(min_distance)

    # ---- lane-dense padding --------------------------------------------------
    itemsize = jnp.dtype(z.dtype).itemsize
    sublane = {4: 8, 2: 16, 1: 32}.get(itemsize, 8)
    Dp = _round_up(max(D, 1), 128)
    if B <= 256:
        Bp = _round_up(B, sublane)
        tile = Bp
    else:
        tile = 256
        Bp = _round_up(B, tile)
    num_blocks = Bp // tile

    zp = jnp.pad(z, ((0, Bp - B), (0, Dp - D)))  # exact zeros: norms/dots unchanged

    # Inverse row norms (matches F.normalize eps=1e-12), computed once, O(B*D).
    sq = jnp.sum(jnp.square(zp.astype(jnp.float32)), axis=1)      # (Bp,)
    inv = 1.0 / jnp.maximum(jnp.sqrt(sq), 1e-12)                  # (Bp,)
    inv_col = inv.reshape(Bp, 1)   # scales the rows of a Gram tile
    inv_row = inv.reshape(1, Bp)   # scales the cols of a Gram tile

    kernel = functools.partial(_diversity_tile_kernel, min_distance=min_d)

    partial_out = pl.pallas_call(
        kernel,
        out_shape=jax.ShapeDtypeStruct((num_blocks, 8, 128), jnp.float32),
        grid_spec=pltpu.PrefetchScalarGridSpec(
            num_scalar_prefetch=0,
            grid=(num_blocks, num_blocks),
            in_specs=[
                pl.BlockSpec((tile, Dp), lambda i, j: (i, 0)),   # z row tile
                pl.BlockSpec((tile, Dp), lambda i, j: (j, 0)),   # z col tile
                pl.BlockSpec((tile, 1), lambda i, j: (i, 0)),    # inv norms (rows)
                pl.BlockSpec((1, tile), lambda i, j: (0, j)),    # inv norms (cols)
            ],
            out_specs=pl.BlockSpec((1, 8, 128), lambda i, j: (i, 0, 0)),
        ),
        compiler_params=pltpu.CompilerParams(
            dimension_semantics=("parallel", "arbitrary")),
    )(zp, zp, inv_col, inv_row)

    # Every lane of a partial block holds the same per-row-block running sum.
    total_all = jnp.sum(partial_out[:, 0, 0])

    # Remove the diagonal (counted once, on i == j tiles) analytically.
    diag_sim = sq * inv * inv
    diag_hinge = jnp.clip(diag_sim - (1.0 - min_d), 0.0, min_d)
    total_off_diag = total_all - jnp.sum(diag_hinge)

    # Remove the zero-padded rows' off-diagonal entries: each is exactly
    # hinge(sim=0) = clip(min_d - 1, 0, min_d), a compile-time constant.
    h0 = min(max(min_d - 1.0, 0.0), min_d)
    n_pad_off_diag = (Bp * Bp - Bp) - (B * B - B)
    total_off_diag = total_off_diag - h0 * n_pad_off_diag

    # Mean over the B*(B-1) real off-diagonal entries.
    return total_off_diag / jnp.float32(B * (B - 1))


def _reference(z, min_distance=0.1):
    # Pure-JAX mirror of the PyTorch module, for sanity checking.
    B = z.shape[0]
    zf = z.astype(jnp.float32)
    z_n = zf / jnp.maximum(jnp.linalg.norm(zf, axis=1, keepdims=True), 1e-12)
    sim = jnp.clip(z_n @ z_n.T, -1.0, 1.0)
    mask = ~jnp.eye(B, dtype=bool)
    dist = 1.0 - sim
    hinge = jnp.maximum(min_distance - dist, 0.0)
    return jnp.sum(jnp.where(mask, hinge, 0.0)) / (B * (B - 1))


if __name__ == "__main__":
    key = jax.random.PRNGKey(0)
    k1, k2, k3 = jax.random.split(key, 3)

    # Test 1: B=8, D=32, near-duplicate pair so some hinges are active.
    z1 = jax.random.normal(k1, (8, 32), dtype=jnp.float32)
    z1 = z1.at[1].set(z1[0] + 0.01 * jax.random.normal(k2, (32,), dtype=jnp.float32))
    loss1 = latent_diversity_loss(z1, min_distance=0.1)
    jax.block_until_ready(loss1)
    ref1 = _reference(z1, 0.1)
    assert jnp.allclose(loss1, ref1, atol=1e-5, rtol=1e-4), (loss1, ref1)

    # Test 2: B=12, D=40 (exercises B and D padding), exact duplicate + zero-norm row.
    z2 = jax.random.normal(k3, (12, 40), dtype=jnp.float32)
    z2 = z2.at[5].set(z2[4])   # duplicate -> sim == 1 on that pair
    z2 = z2.at[7].set(0.0)     # zero-norm row (F.normalize -> zero vector)
    loss2 = latent_diversity_loss(z2, min_distance=0.5)
    jax.block_until_ready(loss2)
    ref2 = _reference(z2, 0.5)
    assert jnp.allclose(loss2, ref2, atol=1e-5, rtol=1e-4), (loss2, ref2)

    print("KERNEL_OK")
</pallas_src>

<mosaic_0001>
module attributes {stable_mosaic.version = 11 : i64} {
  func.func @_diversity_tile_kernel(%arg0: i32, %arg1: i32, %arg2: memref<8x128xf32, #tpu.memory_space<vmem>>, %arg3: memref<8x128xf32, #tpu.memory_space<vmem>>, %arg4: memref<8x1xf32, #tpu.memory_space<vmem>>, %arg5: memref<1x8xf32, #tpu.memory_space<vmem>>, %arg6: memref<1x8x128xf32, #tpu.memory_space<vmem>>) attributes {dimension_semantics = [#tpu.dimension_semantics<parallel>, #tpu.dimension_semantics<arbitrary>], iteration_bounds = array<i64: 1, 1>, scalar_prefetch = 0 : i64, scratch_operands = 0 : i64, tpu.core_type = #tpu.core_type<tc>, window_params = [{transform_indices = @transform_0, window_bounds = array<i64: 8, 128>}, {transform_indices = @transform_1, window_bounds = array<i64: 8, 128>}, {transform_indices = @transform_2, window_bounds = array<i64: 8, 1>}, {transform_indices = @transform_3, window_bounds = array<i64: 1, 8>}, {transform_indices = @transform_4, window_bounds = array<i64: 1, 8, 128>}]} {
    %c0_i32 = arith.constant 0 : i32
    %0 = arith.cmpi eq, %arg1, %c0_i32 : i32
    %1 = arith.extui %0 : i1 to i32
    %c0_i32_0 = arith.constant 0 : i32
    %2 = arith.cmpi ne, %1, %c0_i32_0 : i32
    scf.if %2 {
      %cst = arith.constant 0.000000e+00 : f32
      %6 = vector.broadcast %cst : f32 to vector<1x8x128xf32>
      %c0 = arith.constant 0 : index
      %c0_2 = arith.constant 0 : index
      %c0_3 = arith.constant 0 : index
      %7 = vector.load %arg6[%c0, %c0_2, %c0_3] : memref<1x8x128xf32, #tpu.memory_space<vmem>>, vector<1x8x128xf32>
      tpu.vector_store %arg6[%c0, %c0_2, %c0_3], %6 {strides = array<i32>} : memref<1x8x128xf32, #tpu.memory_space<vmem>>, vector<1x8x128xf32>,
    } else {
    }
    %3 = arith.cmpi sge, %arg1, %arg0 : i32
    %4 = arith.extui %3 : i1 to i32
    %c0_i32_1 = arith.constant 0 : i32
    %5 = arith.cmpi ne, %4, %c0_i32_1 : i32
    scf.if %5 {
      %c0 = arith.constant 0 : index
      %c0_2 = arith.constant 0 : index
      %6 = vector.load %arg2[%c0, %c0_2] : memref<8x128xf32, #tpu.memory_space<vmem>>, vector<8x128xf32>
      %c0_3 = arith.constant 0 : index
      %c0_4 = arith.constant 0 : index
      %7 = vector.load %arg3[%c0_3, %c0_4] : memref<8x128xf32, #tpu.memory_space<vmem>>, vector<8x128xf32>
      %cst = arith.constant dense<0.000000e+00> : vector<8x8xf32>
      %8 = tpu.matmul %6, %7, %cst {dimension_numbers = #tpu.dot_dimension_numbers<[1], [1], [0], [0], [0, 0, 1, 0], [], []>} : vector<8x128xf32>, vector<8x128xf32>, vector<8x8xf32> -> vector<8x8xf32>
      %c0_5 = arith.constant 0 : index
      %c0_6 = arith.constant 0 : index
      %9 = vector.load %arg4[%c0_5, %c0_6] : memref<8x1xf32, #tpu.memory_space<vmem>>, vector<8x1xf32>
      %10 = vector.broadcast %9 : vector<8x1xf32> to vector<8x8xf32>
      %11 = arith.mulf %8, %10 : vector<8x8xf32>
      %c0_7 = arith.constant 0 : index
      %c0_8 = arith.constant 0 : index
      %12 = vector.load %arg5[%c0_7, %c0_8] : memref<1x8xf32, #tpu.memory_space<vmem>>, vector<1x8xf32>
      %13 = vector.broadcast %12 : vector<1x8xf32> to vector<8x8xf32>
      %14 = arith.mulf %11, %13 : vector<8x8xf32>
      %cst_9 = arith.constant 0.899999976 : f32
      %15 = vector.broadcast %cst_9 : f32 to vector<8x8xf32>
      %16 = arith.subf %14, %15 : vector<8x8xf32>
      %cst_10 = arith.constant 0.000000e+00 : f32
      %cst_11 = arith.constant 1.000000e-01 : f32
      %17 = vector.broadcast %cst_10 : f32 to vector<8x8xf32>
      %18 = arith.maximumf %17, %16 : vector<8x8xf32>
      %19 = vector.broadcast %cst_11 : f32 to vector<8x8xf32>
      %20 = arith.minimumf %19, %18 : vector<8x8xf32>
      %21 = arith.cmpi sgt, %arg1, %arg0 : i32
      %cst_12 = arith.constant 2.000000e+00 : f32
      %cst_13 = arith.constant 1.000000e+00 : f32
      %22 = arith.select %21, %cst_12, %cst_13 : f32
      %c0_14 = arith.constant 0 : index
      %c0_15 = arith.constant 0 : index
      %c0_16 = arith.constant 0 : index
      %23 = vector.load %arg6[%c0_14, %c0_15, %c0_16] : memref<1x8x128xf32, #tpu.memory_space<vmem>>, vector<1x8x128xf32>
      %24 = vector.shape_cast %20 : vector<8x8xf32> to vector<1x8x8xf32>
      %cst_17 = arith.constant dense<0.000000e+00> : vector<1xf32>
      %25 = vector.multi_reduction <add>, %24, %cst_17 [1, 2] : vector<1x8x8xf32> to vector<1xf32>
      %26 = vector.shape_cast %25 : vector<1xf32> to vector<1x1x1xf32>
      %27 = vector.extract %26[0, 0, 0] : f32 from vector<1x1x1xf32>
      %28 = arith.mulf %22, %27 : f32
      %29 = vector.broadcast %28 : f32 to vector<1x8x128xf32>
      %30 = arith.addf %23, %29 : vector<1x8x128xf32>
      %c0_18 = arith.constant 0 : index
      %c0_19 = arith.constant 0 : index
      %c0_20 = arith.constant 0 : index
      %31 = vector.load %arg6[%c0_18, %c0_19, %c0_20] : memref<1x8x128xf32, #tpu.memory_space<vmem>>, vector<1x8x128xf32>
      tpu.vector_store %arg6[%c0_18, %c0_19, %c0_20], %30 {strides = array<i32>} : memref<1x8x128xf32, #tpu.memory_space<vmem>>, vector<1x8x128xf32>,
    } else {
    }
    return
  }
  func.func @transform_0(%arg0: i32, %arg1: i32) -> (i32, i32) {
    %c0_i32 = arith.constant 0 : i32
    %c0_i32_0 = arith.constant 0 : i32
    return %arg0, %c0_i32 : i32, i32
  }
  func.func @transform_1(%arg0: i32, %arg1: i32) -> (i32, i32) {
    %c0_i32 = arith.constant 0 : i32
    %c0_i32_0 = arith.constant 0 : i32
    return %arg1, %c0_i32 : i32, i32
  }
  func.func @transform_2(%arg0: i32, %arg1: i32) -> (i32, i32) {
    %c0_i32 = arith.constant 0 : i32
    %c0_i32_0 = arith.constant 0 : i32
    return %arg0, %c0_i32 : i32, i32
  }
  func.func @transform_3(%arg0: i32, %arg1: i32) -> (i32, i32) {
    %c0_i32 = arith.constant 0 : i32
    %c0_i32_0 = arith.constant 0 : i32
    return %c0_i32, %arg1 : i32, i32
  }
  func.func @transform_4(%arg0: i32, %arg1: i32) -> (i32, i32, i32) {
    %c0_i32 = arith.constant 0 : i32
    %c0_i32_0 = arith.constant 0 : i32
    %c0_i32_1 = arith.constant 0 : i32
    return %arg0, %c0_i32, %c0_i32_0 : i32, i32, i32
  }
}

</mosaic_0001>

<llo_original>
// kernel: tpu_custom_call.1
$region0: #{tpu_custom_call.1}
  #allocation0 [shape = 'u32[]', space=smem, size = 0x4, offset = 0x4, fixed_abs, tag = 'smem constant byte address 0x4 - core index']
  #allocation1 [shape = 'u32[144,128]{1,0:T(1,128)}', space=vmem, size = 0x12000, scoped, tag = 'internal scratch']
  %s0 = inlined_call_operand.vmem [shape: f32[8,128], index: 0, kind: input, shape index: {}]
  %s1 = inlined_call_operand.hbm [shape: f32[8,128], index: 1, kind: input, shape index: {}]
  %s2 = inlined_call_operand.vmem [shape: f32[8,1], index: 2, kind: input, shape index: {}]
  %s3 = inlined_call_operand.vmem [shape: f32[1,8], index: 3, kind: input, shape index: {}]
  %s4 = inlined_call_operand.hbm [shape: f32[1,8,128], index: 4, kind: output, shape index: {}]
  %s5 = sld [smem:[#allocation0]]
  $region38: #{tpu_custom_call.1} parent=0
    _
  %s7 = ssub.s32 1, %s5
  %s8 = scalar_select 0, %s7, %s5
  $region1: #{tpu_custom_call.1} parent=0
    #allocation2 [shape = 'u8[4096]{0}', space=vmem, size = 0x1000, scoped, tag = 'input window, operand 1, single buffered']
    #allocation3 [shape = 's32[1]{0}', space=sflag, size = 0x4, scoped, tag = 'scoped memory for tpu_custom_call.1']
    #allocation4 [shape = 's32[1]{0}', space=sflag, size = 0x4, scoped, tag = 'scoped memory for tpu_custom_call.1']
    #allocation5 [shape = 'u8[4096]{0}', space=vmem, size = 0x1000, scoped, tag = 'output window, operand 0, single buffered']
    %9 = vsyncpa [#allocation3], 0
    %10 = vsyncpa [#allocation4], 0
    // Predicated region
    $region2: #{tpu_custom_call.1} parent=1 // pred_check
      _
    $region3: #{tpu_custom_call.1} parent=1 // pred_check_branch
      %12 = sbr.rel (0) target = $region5
    $region4: #{tpu_custom_call.1} parent=1 // pred_region
      _
    $region5: #{tpu_custom_call.1} parent=1 // pred_fallthru
      _
    // Predicated region
    $region6: #{tpu_custom_call.1} parent=1 // pred_check
      _
    $region7: #{tpu_custom_call.1} parent=1 // pred_check_branch
      %14 = sbr.rel (0) target = $region9
    $region8: #{tpu_custom_call.1} parent=1 // pred_region
      %s16 = ssub.s32 128, 128
      %17 = vsyncadd [#allocation3], %s16
      %s19 = sshll.u32 [#allocation2], 4
      %s20 = int_to_ptr.vmem [resolvable:$true] %s19
      %22 = dma.hbm_to_vmem [thread:$0]  %s1, 128, %s20, [#allocation3]
    $region9: #{tpu_custom_call.1} parent=1 // pred_fallthru
      _
    // Predicated region
    $region10: #{tpu_custom_call.1} parent=1 // pred_check
      _
    $region11: #{tpu_custom_call.1} parent=1 // pred_check_branch
      %24 = sbr.rel (0) target = $region13
    $region12: #{tpu_custom_call.1} parent=1 // pred_region
      _
    $region13: #{tpu_custom_call.1} parent=1 // pred_fallthru
      _
    // Predicated region
    $region14: #{tpu_custom_call.1} parent=1 // pred_check
      _
    $region15: #{tpu_custom_call.1} parent=1 // pred_check_branch
      %26 = sbr.rel (0) target = $region17
    $region16: #{tpu_custom_call.1} parent=1 // pred_region
      _
    $region17: #{tpu_custom_call.1} parent=1 // pred_fallthru
      _
    // Predicated region
    $region18: #{tpu_custom_call.1} parent=1 // pred_check
      _
    $region19: #{tpu_custom_call.1} parent=1 // pred_check_branch
      %28 = sbr.rel (0) target = $region21
    $region20: #{tpu_custom_call.1} parent=1 // pred_region
      %29 = dma.done [#allocation3], 128
    $region21: #{tpu_custom_call.1} parent=1 // pred_fallthru
      _
    %p30 = scmp.eq.s32.totalorder 0, 0
    // Predicated region
    $region22: #{tpu_custom_call.1} parent=1 // pred_check
      %p31 = pneg %p30
    $region23: #{tpu_custom_call.1} parent=1 // pred_check_branch
      %33 = sbr.rel (%p31) target = $region25
    $region24: #{tpu_custom_call.1} parent=1 // pred_region
      %34 = vst [vmem:[#allocation5] sm:$0xff] 0.0
    $region25: #{tpu_custom_call.1} parent=1 // pred_fallthru
      _
    %p35 = scmp.ge.s32.totalorder 0, 0
    // Predicated region
    $region26: #{tpu_custom_call.1} parent=1 // pred_check
      %p36 = pneg %p35
    $region27: #{tpu_custom_call.1} parent=1 // pred_check_branch
      %38 = sbr.rel (%p36) target = $region29
    $region28: #{tpu_custom_call.1} parent=1 // pred_region
      %v39 = vld [vmem:[%s0] sm:$0xff]
      %v40 = vld [vmem:[#allocation2] sm:$0xff]
      %41 = vmatprep.subr.mxu0 0.0
      %42 = vmatpush1.xpose.msra.mxu0 %v40
      %43 = vmatprep.subr.mxu0 0.0
      %44 = vmatpush1.xpose.msra.mxu0 0.0
      %45 = vmatprep.subr.mxu0 0.0
      %46 = vmatpush1.xpose.msra.mxu0 0.0
      %47 = vmatprep.subr.mxu0 0.0
      %48 = vmatpush1.xpose.msra.mxu0 0.0
      %49 = vmatprep.subr.mxu0 0.0
      %50 = vmatpush1.xpose.msra.mxu0 0.0
      %51 = vmatprep.subr.mxu0 0.0
      %52 = vmatpush1.xpose.msra.mxu0 0.0
      %53 = vmatprep.subr.mxu0 0.0
      %54 = vmatpush1.xpose.msra.mxu0 0.0
      %55 = vmatprep.subr.mxu0 0.0
      %56 = vmatpush1.xpose.msra.mxu0 0.0
      %57 = vmatprep.subr.mxu0 0.0
      %58 = vmatpush1.xpose.msra.mxu0 0.0
      %59 = vmatprep.subr.mxu0 0.0
      %60 = vmatpush1.xpose.msra.mxu0 0.0
      %61 = vmatprep.subr.mxu0 0.0
      %62 = vmatpush1.xpose.msra.mxu0 0.0
      %63 = vmatprep.subr.mxu0 0.0
      %64 = vmatpush1.xpose.msra.mxu0 0.0
      %65 = vmatprep.subr.mxu0 0.0
      %66 = vmatpush1.xpose.msra.mxu0 0.0
      %67 = vmatprep.subr.mxu0 0.0
      %68 = vmatpush1.xpose.msra.mxu0 0.0
      %69 = vmatprep.subr.mxu0 0.0
      %70 = vmatpush1.xpose.msra.mxu0 0.0
      %71 = vmatprep.subr.mxu0 0.0
      %72 = vmatpush1.xpose.msra.mxu0 0.0
      %73 = vmatprep.subr.mxu0 0.0
      %74 = vmatpush1.xpose.msra.mxu0 0.0
      %75 = vmatprep.subr.mxu0 0.0
      %76 = vmatpush1.xpose.msra.mxu0 0.0
      %77 = vmatprep.subr.mxu0 0.0
      %78 = vmatpush1.xpose.msra.mxu0 0.0
      %79 = vmatprep.subr.mxu0 0.0
      %80 = vmatpush1.xpose.msra.mxu0 0.0
      %81 = vmatprep.subr.mxu0 0.0
      %82 = vmatpush1.xpose.msra.mxu0 0.0
      %83 = vmatprep.subr.mxu0 0.0
      %84 = vmatpush1.xpose.msra.mxu0 0.0
      %85 = vmatprep.subr.mxu0 0.0
      %86 = vmatpush1.xpose.msra.mxu0 0.0
      %87 = vmatprep.subr.mxu0 0.0
      %88 = vmatpush1.xpose.msra.mxu0 0.0
      %89 = vmatprep.subr.mxu0 0.0
      %90 = vmatpush1.xpose.msra.mxu0 0.0
      %91 = vmatprep.subr.mxu0 0.0
      %92 = vmatpush1.xpose.msra.mxu0 0.0
      %93 = vmatprep.subr.mxu0 0.0
      %94 = vmatpush1.xpose.msra.mxu0 0.0
      %95 = vmatprep.subr.mxu0 0.0
      %96 = vmatpush1.xpose.msra.mxu0 0.0
      %97 = vmatprep.subr.mxu0 0.0
      %98 = vmatpush1.xpose.msra.mxu0 0.0
      %99 = vmatprep.subr.mxu0 0.0
      %100 = vmatpush1.xpose.msra.mxu0 0.0
      %101 = vmatprep.subr.mxu0 0.0
      %102 = vmatpush1.xpose.msra.mxu0 0.0
      %103 = vmatprep.subr.mxu0 0.0
      %104 = vmatpush1.xpose.msra.mxu0 0.0
      %105 = vmatprep.mubr.f32.mxu0 0.0
      %106 = vmatmul.mubr.f32.gmra.mrb[0].mxu0 %v39
      %v107 = vpop.f32.mrb[0].mxu0
      %v108 = vadd.f32 0.0, %v107
      %v109 = vpop.f32.mrb[0].mxu0
      %110 = vdwg.mxu0
      %v111 = vld [vmem:[%s2] sm:$0xff]
      %113 = vset.pattern.permute.xlu0 0
      %114 = vperm.xlu0 %113, %v111
      %v115 = vpop.permute.xlu0 %114
      %v117 = vmul.f32 %v108, %v115
      %v118 = vld [vmem:[%s3] sm:$0x1]
      %v120 = vlaneseq
      %v121 = vshrl.u32 %v120, 7
      %v122 = vsub.s32 0, %v121
      %v123 = vrot.slane %v118, %v122
      %v125 = vmul.f32 %v117, %v123
      %v126 = vsub.f32 %v125, 0.9
      %v127 = vmax.f32 %v126, 0.0
      %v128 = vmin.f32 %v127, 0.1
      %p129 = scmp.gt.s32.totalorder 0, 0
      %s130 = scalar_select %p129, 2.0, 1.0
      %v131 = vld [vmem:[#allocation5] sm:$0xff]
      %vm132 = vcmask 64512
      %v133 = vsel %vm132, %v128, 0.0
      %134 = vadd.xlane.f32.xlu0 %v133
      %v135 = vpop.xlane.xlu0 %134
      %v136 = vrot.slane %v135, 4
      %v137 = vadd.f32 %v135, %v136
      %v138 = vrot.slane %v137, 2
      %v139 = vadd.f32 %v137, %v138
      %v140 = vrot.slane %v139, 1
      %v141 = vadd.f32 %v139, %v140
      %s142 = vtos %v141
      %s143 = smul.f32 %s130, %s142
      %v144 = vstv %s143
      %v145 = vadd.f32 %v131, %v144
      %146 = vst [vmem:[#allocation5] sm:$0xff] %v145
    $region29: #{tpu_custom_call.1} parent=1 // pred_fallthru
      _
    // Predicated region
    $region30: #{tpu_custom_call.1} parent=1 // pred_check
      _
    $region31: #{tpu_custom_call.1} parent=1 // pred_check_branch
      %148 = sbr.rel (0) target = $region33
    $region32: #{tpu_custom_call.1} parent=1 // pred_region
      %s150 = ssub.s32 128, 128
      %151 = vsyncadd [#allocation4], %s150
      %s153 = sshll.u32 [#allocation5], 4
      %s154 = int_to_ptr.vmem [resolvable:$true] %s153
      %156 = dma.vmem_to_hbm [thread:$0]  %s154, 128, %s4, [#allocation4]
    $region33: #{tpu_custom_call.1} parent=1 // pred_fallthru
      _
    // Predicated region
    $region34: #{tpu_custom_call.1} parent=1 // pred_check
      _
    $region35: #{tpu_custom_call.1} parent=1 // pred_check_branch
      %158 = sbr.rel (0) target = $region37
    $region36: #{tpu_custom_call.1} parent=1 // pred_region
      %159 = dma.done [#allocation4], 128
    $region37: #{tpu_custom_call.1} parent=1 // pred_fallthru
      _
    %160 = vsyncpa [#allocation3], 1
    %161 = vsyncpa [#allocation4], 1

</llo_original>
